<compile_context>
chip_gen: v7x
topology: tpu7x:2x2x1
jax: 0.10.0
libtpu: 0.0.40
codegen_flags: <defaults>
</compile_context>

<pallas_src>
import functools

import jax
import jax.numpy as jnp
from jax.experimental import pallas as pl
from jax.experimental.pallas import tpu as pltpu

LOG_SCALE_MAX = 2.0
LOG_SCALE_MIN = -10.0


def _round_up(x, m):
    return (x + m - 1) // m * m


def vae_kernel(x_ref, weL_ref, weS_ref, beL_ref, beS_ref, wd_ref, bd_ref, eps_ref,
               xhat_ref, loc_ref, logscale_ref):
    # compute dtype follows the (possibly bf16) weights; accumulate in fp32
    cdt = weL_ref.dtype
    x = x_ref[...].astype(cdt)

    # --- encoder (split weights: two lane-dense dots, no column slicing) ---
    loc = jnp.dot(x, weL_ref[...], preferred_element_type=jnp.float32) + beL_ref[...]
    log_scale = jnp.dot(x, weS_ref[...], preferred_element_type=jnp.float32) + beS_ref[...]
    log_scale = jnp.clip(log_scale, LOG_SCALE_MIN, LOG_SCALE_MAX)

    # --- reparameterization (fp32 epilogue) ---
    z_lat = loc + jnp.exp(0.5 * log_scale) * eps_ref[...]

    # --- decoder + sigmoid ---
    logits = jnp.dot(z_lat.astype(cdt), wd_ref[...],
                     preferred_element_type=jnp.float32) + bd_ref[...]
    xhat_ref[...] = jax.nn.sigmoid(logits)

    loc_ref[...] = loc
    logscale_ref[...] = log_scale


@functools.partial(jax.jit, static_argnames=("deterministic", "block_rows", "use_bf16"))
def vae_forward(x, params, eps=None, *, deterministic=False, block_rows=256,
                use_bf16=True):
    """x: (B, in_features) f32. params = (we (in,2*hid), be (1,2*hid), wd (hid,in), bd (1,in)).
    Returns (x_hat (B,in), loc (B,hid), log_scale (B,hid))."""
    we, be, wd, bd = params
    B, in_features = x.shape
    hid = wd.shape[0]

    # ---- layout plumbing (wrapper side): split + pad to 128-aligned hidden ----
    H = _round_up(hid, 128)
    ph = H - hid
    be = be.reshape(1, -1).astype(jnp.float32)
    bd = bd.reshape(1, -1).astype(jnp.float32)
    we_loc, we_ls = we[:, :hid], we[:, hid:]
    be_loc, be_ls = be[:, :hid], be[:, hid:]
    if ph:
        we_loc = jnp.pad(we_loc, ((0, 0), (0, ph)))
        we_ls = jnp.pad(we_ls, ((0, 0), (0, ph)))
        be_loc = jnp.pad(be_loc, ((0, 0), (0, ph)))
        be_ls = jnp.pad(be_ls, ((0, 0), (0, ph)))
        wd = jnp.pad(wd, ((0, ph), (0, 0)))          # zero rows: padded latents contribute 0

    cdt = jnp.bfloat16 if use_bf16 else jnp.float32
    we_loc, we_ls, wd = we_loc.astype(cdt), we_ls.astype(cdt), wd.astype(cdt)
    x_in = x.astype(cdt)                              # halve activation DMA bytes in bf16 mode

    # ---- eps (padded latent columns get eps=0 -> z_lat padded cols are exactly 0) ----
    # TODO(synk): generate eps in-kernel with pltpu.prng_seed/prng_random_bits to drop this HBM stream.
    if deterministic or eps is None:
        eps_p = jnp.zeros((B, H), jnp.float32)
    else:
        eps_p = jnp.pad(eps.astype(jnp.float32), ((0, 0), (0, ph))) if ph else eps.astype(jnp.float32)

    # ---- batch tiling: TB multiple of 8, pad B up to a multiple of TB ----
    TB = min(block_rows, _round_up(B, 8))
    Bp = _round_up(B, TB)
    if Bp != B:
        x_in = jnp.pad(x_in, ((0, Bp - B), (0, 0)))
        eps_p = jnp.pad(eps_p, ((0, Bp - B), (0, 0)))
    grid = (Bp // TB,)

    def row_spec(cols):
        return pl.BlockSpec((TB, cols), lambda i: (i, 0))

    def resident(shape):
        return pl.BlockSpec(shape, lambda i: (0, 0))

    in_specs = [
        row_spec(in_features),              # x
        resident((in_features, H)),         # we_loc
        resident((in_features, H)),         # we_ls
        resident((1, H)),                   # be_loc
        resident((1, H)),                   # be_ls
        resident((H, in_features)),         # wd
        resident((1, in_features)),         # bd
        row_spec(H),                        # eps
    ]
    out_specs = (row_spec(in_features), row_spec(H), row_spec(H))
    out_shapes = (
        jax.ShapeDtypeStruct((Bp, in_features), jnp.float32),  # x_hat
        jax.ShapeDtypeStruct((Bp, H), jnp.float32),            # loc (padded)
        jax.ShapeDtypeStruct((Bp, H), jnp.float32),            # log_scale (padded)
    )

    itemsize = jnp.dtype(cdt).itemsize
    cost = pl.CostEstimate(
        flops=2 * Bp * (in_features * 2 * H + H * in_features),
        transcendentals=Bp * (H + in_features),
        bytes_accessed=(Bp * in_features * itemsize + Bp * H * 4            # x, eps
                        + (2 * in_features * H + H * in_features) * itemsize  # weights
                        + (2 * H + in_features) * 4                          # biases
                        + Bp * (in_features + 2 * H) * 4),                    # outputs
    )

    x_hat, loc_p, ls_p = pl.pallas_call(
        vae_kernel,
        grid=grid,
        in_specs=in_specs,
        out_specs=out_specs,
        out_shape=out_shapes,
        compiler_params=pltpu.CompilerParams(
            dimension_semantics=("parallel",),
            vmem_limit_bytes=64 * 1024 * 1024,
        ),
        cost_estimate=cost,
    )(x_in, we_loc, we_ls, be_loc, be_ls, wd, bd, eps_p)

    return x_hat[:B], loc_p[:B, :hid], ls_p[:B, :hid]


def init_params(key, in_features, hid_features):
    """PyTorch-like init: U(-1/sqrt(fan_in), 1/sqrt(fan_in)); weights stored (in, out)."""
    k1, k2, k3, k4 = jax.random.split(key, 4)
    lim_e = 1.0 / jnp.sqrt(in_features)
    lim_d = 1.0 / jnp.sqrt(hid_features)
    we = jax.random.uniform(k1, (in_features, 2 * hid_features),
                            minval=-lim_e, maxval=lim_e, dtype=jnp.float32)
    be = jax.random.uniform(k2, (1, 2 * hid_features),
                            minval=-lim_e, maxval=lim_e, dtype=jnp.float32)
    wd = jax.random.uniform(k3, (hid_features, in_features),
                            minval=-lim_d, maxval=lim_d, dtype=jnp.float32)
    bd = jax.random.uniform(k4, (1, in_features),
                            minval=-lim_d, maxval=lim_d, dtype=jnp.float32)
    return we, be, wd, bd


if __name__ == "__main__":
    batch = 8
    in_features = 128
    hid_features = 64

    key = jax.random.PRNGKey(0)
    k_params, k_x, k_eps = jax.random.split(key, 3)

    params = init_params(k_params, in_features, hid_features)
    x = jax.random.uniform(k_x, (batch, in_features), dtype=jnp.float32)
    eps = jax.random.normal(k_eps, (batch, hid_features), dtype=jnp.float32)

    # plain-JAX reference (fp32)
    we, be, wd, bd = params
    z_ref = x @ we + be
    loc_ref = z_ref[:, :hid_features]
    ls_ref = jnp.clip(z_ref[:, hid_features:], LOG_SCALE_MIN, LOG_SCALE_MAX)
    z_lat = loc_ref + jnp.exp(0.5 * ls_ref) * eps
    xhat_ref = jax.nn.sigmoid(z_lat @ wd + bd)

    # fp32 kernel path: exact match
    x_hat, loc, log_scale = vae_forward(x, params, eps, deterministic=False,
                                        use_bf16=False)
    jax.block_until_ready((x_hat, loc, log_scale))
    assert x_hat.shape == (batch, in_features)
    assert loc.shape == (batch, hid_features)
    assert log_scale.shape == (batch, hid_features)
    assert jnp.allclose(x_hat, xhat_ref, atol=1e-5)
    assert jnp.allclose(loc, loc_ref, atol=1e-5)
    assert jnp.allclose(log_scale, ls_ref, atol=1e-5)

    # bf16 MXU path: looser tolerance
    x_hat_b, loc_b, ls_b = vae_forward(x, params, eps, deterministic=False,
                                       use_bf16=True)
    jax.block_until_ready((x_hat_b, loc_b, ls_b))
    assert jnp.allclose(x_hat_b, xhat_ref, atol=5e-2)
    assert jnp.allclose(loc_b, loc_ref, atol=5e-2)
    assert jnp.allclose(ls_b, ls_ref, atol=5e-2)

    # deterministic path (z_ = loc)
    xhat_det_ref = jax.nn.sigmoid(loc_ref @ wd + bd)
    x_hat_d, _, _ = vae_forward(x, params, deterministic=True, use_bf16=False)
    jax.block_until_ready(x_hat_d)
    assert jnp.allclose(x_hat_d, xhat_det_ref, atol=1e-5)

    print("KERNEL_OK")
</pallas_src>

<mosaic_0001>
module attributes {stable_mosaic.version = 11 : i64} {
  func.func @vae_kernel(%arg0: i32, %arg1: memref<8x128xf32, #tpu.memory_space<vmem>>, %arg2: memref<128x128xf32, #tpu.memory_space<vmem>>, %arg3: memref<128x128xf32, #tpu.memory_space<vmem>>, %arg4: memref<1x128xf32, #tpu.memory_space<vmem>>, %arg5: memref<1x128xf32, #tpu.memory_space<vmem>>, %arg6: memref<128x128xf32, #tpu.memory_space<vmem>>, %arg7: memref<1x128xf32, #tpu.memory_space<vmem>>, %arg8: memref<8x128xf32, #tpu.memory_space<vmem>>, %arg9: memref<8x128xf32, #tpu.memory_space<vmem>>, %arg10: memref<8x128xf32, #tpu.memory_space<vmem>>, %arg11: memref<8x128xf32, #tpu.memory_space<vmem>>) attributes {dimension_semantics = [#tpu.dimension_semantics<parallel>], iteration_bounds = array<i64: 1>, scalar_prefetch = 0 : i64, scratch_operands = 0 : i64, tpu.core_type = #tpu.core_type<tc>, window_params = [{transform_indices = @transform_0, window_bounds = array<i64: 8, 128>}, {pipeline_mode = #tpu.pipeline_mode<synchronous>, transform_indices = @transform_1, window_bounds = array<i64: 128, 128>}, {pipeline_mode = #tpu.pipeline_mode<synchronous>, transform_indices = @transform_2, window_bounds = array<i64: 128, 128>}, {pipeline_mode = #tpu.pipeline_mode<synchronous>, transform_indices = @transform_3, window_bounds = array<i64: 1, 128>}, {pipeline_mode = #tpu.pipeline_mode<synchronous>, transform_indices = @transform_4, window_bounds = array<i64: 1, 128>}, {pipeline_mode = #tpu.pipeline_mode<synchronous>, transform_indices = @transform_5, window_bounds = array<i64: 128, 128>}, {pipeline_mode = #tpu.pipeline_mode<synchronous>, transform_indices = @transform_6, window_bounds = array<i64: 1, 128>}, {transform_indices = @transform_7, window_bounds = array<i64: 8, 128>}, {transform_indices = @transform_8, window_bounds = array<i64: 8, 128>}, {transform_indices = @transform_9, window_bounds = array<i64: 8, 128>}, {transform_indices = @transform_10, window_bounds = array<i64: 8, 128>}]} {
    %c0 = arith.constant 0 : index
    %c0_0 = arith.constant 0 : index
    %0 = vector.load %arg1[%c0, %c0_0] : memref<8x128xf32, #tpu.memory_space<vmem>>, vector<8x128xf32>
    %c0_1 = arith.constant 0 : index
    %c0_2 = arith.constant 0 : index
    %1 = vector.load %arg2[%c0_1, %c0_2] : memref<128x128xf32, #tpu.memory_space<vmem>>, vector<128x128xf32>
    %cst = arith.constant dense<0.000000e+00> : vector<8x128xf32>
    %2 = tpu.matmul %0, %1, %cst {dimension_numbers = #tpu.dot_dimension_numbers<[1], [0], [0], [1], [0, 0, 1, 1], [], []>} : vector<8x128xf32>, vector<128x128xf32>, vector<8x128xf32> -> vector<8x128xf32>
    %c0_3 = arith.constant 0 : index
    %c0_4 = arith.constant 0 : index
    %3 = vector.load %arg4[%c0_3, %c0_4] : memref<1x128xf32, #tpu.memory_space<vmem>>, vector<1x128xf32>
    %4 = vector.broadcast %3 : vector<1x128xf32> to vector<8x128xf32>
    %5 = arith.addf %2, %4 : vector<8x128xf32>
    %c0_5 = arith.constant 0 : index
    %c0_6 = arith.constant 0 : index
    %6 = vector.load %arg3[%c0_5, %c0_6] : memref<128x128xf32, #tpu.memory_space<vmem>>, vector<128x128xf32>
    %cst_7 = arith.constant dense<0.000000e+00> : vector<8x128xf32>
    %7 = tpu.matmul %0, %6, %cst_7 {dimension_numbers = #tpu.dot_dimension_numbers<[1], [0], [0], [1], [0, 0, 1, 1], [], []>} : vector<8x128xf32>, vector<128x128xf32>, vector<8x128xf32> -> vector<8x128xf32>
    %c0_8 = arith.constant 0 : index
    %c0_9 = arith.constant 0 : index
    %8 = vector.load %arg5[%c0_8, %c0_9] : memref<1x128xf32, #tpu.memory_space<vmem>>, vector<1x128xf32>
    %9 = vector.broadcast %8 : vector<1x128xf32> to vector<8x128xf32>
    %10 = arith.addf %7, %9 : vector<8x128xf32>
    %cst_10 = arith.constant -1.000000e+01 : f32
    %cst_11 = arith.constant 2.000000e+00 : f32
    %11 = vector.broadcast %cst_10 : f32 to vector<8x128xf32>
    %12 = arith.maximumf %11, %10 : vector<8x128xf32>
    %13 = vector.broadcast %cst_11 : f32 to vector<8x128xf32>
    %14 = arith.minimumf %13, %12 : vector<8x128xf32>
    %cst_12 = arith.constant 5.000000e-01 : f32
    %15 = vector.broadcast %cst_12 : f32 to vector<8x128xf32>
    %16 = arith.mulf %15, %14 : vector<8x128xf32>
    %17 = math.exp %16 : vector<8x128xf32>
    %c0_13 = arith.constant 0 : index
    %c0_14 = arith.constant 0 : index
    %18 = vector.load %arg8[%c0_13, %c0_14] : memref<8x128xf32, #tpu.memory_space<vmem>>, vector<8x128xf32>
    %19 = arith.mulf %17, %18 : vector<8x128xf32>
    %20 = arith.addf %5, %19 : vector<8x128xf32>
    %c0_15 = arith.constant 0 : index
    %c0_16 = arith.constant 0 : index
    %21 = vector.load %arg6[%c0_15, %c0_16] : memref<128x128xf32, #tpu.memory_space<vmem>>, vector<128x128xf32>
    %cst_17 = arith.constant dense<0.000000e+00> : vector<8x128xf32>
    %22 = tpu.matmul %20, %21, %cst_17 {dimension_numbers = #tpu.dot_dimension_numbers<[1], [0], [0], [1], [0, 0, 1, 1], [], []>} : vector<8x128xf32>, vector<128x128xf32>, vector<8x128xf32> -> vector<8x128xf32>
    %c0_18 = arith.constant 0 : index
    %c0_19 = arith.constant 0 : index
    %23 = vector.load %arg7[%c0_18, %c0_19] : memref<1x128xf32, #tpu.memory_space<vmem>>, vector<1x128xf32>
    %24 = vector.broadcast %23 : vector<1x128xf32> to vector<8x128xf32>
    %25 = arith.addf %22, %24 : vector<8x128xf32>
    %26 = arith.negf %25 : vector<8x128xf32>
    %27 = math.exp %26 : vector<8x128xf32>
    %cst_20 = arith.constant 1.000000e+00 : f32
    %28 = vector.broadcast %cst_20 : f32 to vector<8x128xf32>
    %29 = arith.addf %28, %27 : vector<8x128xf32>
    %30 = arith.divf %28, %29 : vector<8x128xf32>
    %c0_21 = arith.constant 0 : index
    %c0_22 = arith.constant 0 : index
    %31 = vector.load %arg9[%c0_21, %c0_22] : memref<8x128xf32, #tpu.memory_space<vmem>>, vector<8x128xf32>
    tpu.vector_store %arg9[%c0_21, %c0_22], %30 {strides = array<i32>} : memref<8x128xf32, #tpu.memory_space<vmem>>, vector<8x128xf32>,
    %c0_23 = arith.constant 0 : index
    %c0_24 = arith.constant 0 : index
    %32 = vector.load %arg10[%c0_23, %c0_24] : memref<8x128xf32, #tpu.memory_space<vmem>>, vector<8x128xf32>
    tpu.vector_store %arg10[%c0_23, %c0_24], %5 {strides = array<i32>} : memref<8x128xf32, #tpu.memory_space<vmem>>, vector<8x128xf32>,
    %c0_25 = arith.constant 0 : index
    %c0_26 = arith.constant 0 : index
    %33 = vector.load %arg11[%c0_25, %c0_26] : memref<8x128xf32, #tpu.memory_space<vmem>>, vector<8x128xf32>
    tpu.vector_store %arg11[%c0_25, %c0_26], %14 {strides = array<i32>} : memref<8x128xf32, #tpu.memory_space<vmem>>, vector<8x128xf32>,
    return
  }
  func.func @transform_0(%arg0: i32) -> (i32, i32) {
    %c0_i32 = arith.constant 0 : i32
    %c0_i32_0 = arith.constant 0 : i32
    return %arg0, %c0_i32 : i32, i32
  }
  func.func @transform_1(%arg0: i32) -> (i32, i32) {
    %c0_i32 = arith.constant 0 : i32
    %c0_i32_0 = arith.constant 0 : i32
    %c0_i32_1 = arith.constant 0 : i32
    return %c0_i32, %c0_i32_0 : i32, i32
  }
  func.func @transform_2(%arg0: i32) -> (i32, i32) {
    %c0_i32 = arith.constant 0 : i32
    %c0_i32_0 = arith.constant 0 : i32
    %c0_i32_1 = arith.constant 0 : i32
    return %c0_i32, %c0_i32_0 : i32, i32
  }
  func.func @transform_3(%arg0: i32) -> (i32, i32) {
    %c0_i32 = arith.constant 0 : i32
    %c0_i32_0 = arith.constant 0 : i32
    %c0_i32_1 = arith.constant 0 : i32
    return %c0_i32, %c0_i32_0 : i32, i32
  }
  func.func @transform_4(%arg0: i32) -> (i32, i32) {
    %c0_i32 = arith.constant 0 : i32
    %c0_i32_0 = arith.constant 0 : i32
    %c0_i32_1 = arith.constant 0 : i32
    return %c0_i32, %c0_i32_0 : i32, i32
  }
  func.func @transform_5(%arg0: i32) -> (i32, i32) {
    %c0_i32 = arith.constant 0 : i32
    %c0_i32_0 = arith.constant 0 : i32
    %c0_i32_1 = arith.constant 0 : i32
    return %c0_i32, %c0_i32_0 : i32, i32
  }
  func.func @transform_6(%arg0: i32) -> (i32, i32) {
    %c0_i32 = arith.constant 0 : i32
    %c0_i32_0 = arith.constant 0 : i32
    %c0_i32_1 = arith.constant 0 : i32
    return %c0_i32, %c0_i32_0 : i32, i32
  }
  func.func @transform_7(%arg0: i32) -> (i32, i32) {
    %c0_i32 = arith.constant 0 : i32
    %c0_i32_0 = arith.constant 0 : i32
    return %arg0, %c0_i32 : i32, i32
  }
  func.func @transform_8(%arg0: i32) -> (i32, i32) {
    %c0_i32 = arith.constant 0 : i32
    %c0_i32_0 = arith.constant 0 : i32
    return %arg0, %c0_i32 : i32, i32
  }
  func.func @transform_9(%arg0: i32) -> (i32, i32) {
    %c0_i32 = arith.constant 0 : i32
    %c0_i32_0 = arith.constant 0 : i32
    return %arg0, %c0_i32 : i32, i32
  }
  func.func @transform_10(%arg0: i32) -> (i32, i32) {
    %c0_i32 = arith.constant 0 : i32
    %c0_i32_0 = arith.constant 0 : i32
    return %arg0, %c0_i32 : i32, i32
  }
}

</mosaic_0001>

<llo_original>
// kernel: vae_forward.1
$region0: #{vae_forward.1}
  #allocation0 [shape = 'u32[]', space=smem, size = 0x4, offset = 0x4, fixed_abs, tag = 'smem constant byte address 0x4 - core index']
  #allocation1 [shape = 'u32[144,128]{1,0:T(1,128)}', space=vmem, size = 0x12000, scoped, tag = 'internal scratch']
  %s0 = inlined_call_operand.hbm [shape: f32[8,128], index: 0, kind: input, shape index: {}]
  %s1 = inlined_call_operand.hbm [shape: f32[128,128], index: 1, kind: input, shape index: {}]
  %s2 = inlined_call_operand.hbm [shape: f32[128,128], index: 2, kind: input, shape index: {}]
  %s3 = inlined_call_operand.hbm [shape: f32[1,128], index: 3, kind: input, shape index: {}]
  %s4 = inlined_call_operand.hbm [shape: f32[1,128], index: 4, kind: input, shape index: {}]
  %s5 = inlined_call_operand.hbm [shape: f32[128,128], index: 5, kind: input, shape index: {}]
  %s6 = inlined_call_operand.hbm [shape: f32[1,128], index: 6, kind: input, shape index: {}]
  %s7 = inlined_call_operand.hbm [shape: f32[8,128], index: 7, kind: input, shape index: {}]
  %s8 = inlined_call_operand.hbm [shape: f32[8,128], index: 8, kind: output, shape index: {0}]
  %s9 = inlined_call_operand.hbm [shape: f32[8,128], index: 9, kind: output, shape index: {1}]
  %s10 = inlined_call_operand.hbm [shape: f32[8,128], index: 10, kind: output, shape index: {2}]
  %11 = xla_tuple %s8, %s9, %s10
  %s12 = sld [smem:[#allocation0]]
  $region90: #{vae_forward.1} parent=0
    _
  %s14 = ssub.s32 1, %s12
  %s15 = scalar_select 0, %s14, %s12
  $region1: #{vae_forward.1} parent=0
    #allocation2 [shape = 'u8[4096]{0}', space=vmem, size = 0x1000, scoped, tag = 'input window, operand 0, single buffered']
    #allocation3 [shape = 's32[1]{0}', space=sflag, size = 0x4, scoped, tag = 'scoped memory for vae_forward.1']
    #allocation4 [shape = 's32[1]{0}', space=sflag, size = 0x4, scoped, tag = 'scoped memory for vae_forward.1']
    #allocation5 [shape = 'u8[65536]{0}', space=vmem, size = 0x10000, scoped, tag = 'input window, operand 1, single buffered']
    #allocation6 [shape = 's32[1]{0}', space=sflag, size = 0x4, scoped, tag = 'scoped memory for vae_forward.1']
    #allocation7 [shape = 'u8[65536]{0}', space=vmem, size = 0x10000, scoped, tag = 'input window, operand 2, single buffered']
    #allocation8 [shape = 'u8[512]{0}', space=vmem, size = 0x400, scoped, tag = 'input window, operand 3, single buffered']
    #allocation9 [shape = 's32[1]{0}', space=sflag, size = 0x4, scoped, tag = 'scoped memory for vae_forward.1']
    #allocation10 [shape = 'u8[512]{0}', space=vmem, size = 0x400, scoped, tag = 'input window, operand 4, single buffered']
    #allocation11 [shape = 'u8[65536]{0}', space=vmem, size = 0x10000, scoped, tag = 'input window, operand 5, single buffered']
    #allocation12 [shape = 's32[1]{0}', space=sflag, size = 0x4, scoped, tag = 'scoped memory for vae_forward.1']
    #allocation13 [shape = 'u8[512]{0}', space=vmem, size = 0x400, scoped, tag = 'input window, operand 6, single buffered']
    #allocation14 [shape = 'u8[4096]{0}', space=vmem, size = 0x1000, scoped, tag = 'input window, operand 7, single buffered']
    #allocation15 [shape = 's32[1]{0}', space=sflag, size = 0x4, scoped, tag = 'scoped memory for vae_forward.1']
    #allocation16 [shape = 'u8[4096]{0}', space=vmem, size = 0x1000, scoped, tag = 'output window, operand 0, single buffered']
    #allocation17 [shape = 'u8[4096]{0}', space=vmem, size = 0x1000, scoped, tag = 'output window, operand 1, single buffered']
    #allocation18 [shape = 's32[1]{0}', space=sflag, size = 0x4, scoped, tag = 'scoped memory for vae_forward.1']
    #allocation19 [shape = 'u8[4096]{0}', space=vmem, size = 0x1000, scoped, tag = 'output window, operand 2, single buffered']
    %16 = vsyncpa [#allocation3], 0
    %17 = vsyncpa [#allocation6], 0
    %18 = vsyncpa [#allocation9], 0
    %19 = vsyncpa [#allocation12], 0
    %20 = vsyncpa [#allocation15], 0
    %21 = vsyncpa [#allocation4], 0
    %22 = vsyncpa [#allocation18], 0
    // Predicated region
    $region2: #{vae_forward.1} parent=1 // pred_check
      _
    $region3: #{vae_forward.1} parent=1 // pred_check_branch
      %24 = sbr.rel (0) target = $region5
    $region4: #{vae_forward.1} parent=1 // pred_region
      %s26 = ssub.s32 128, 128
      %27 = vsyncadd [#allocation3], %s26
      %s29 = sshll.u32 [#allocation2], 4
      %s30 = int_to_ptr.vmem [resolvable:$true] %s29
      %32 = dma.hbm_to_vmem [thread:$0]  %s0, 128, %s30, [#allocation3]
    $region5: #{vae_forward.1} parent=1 // pred_fallthru
      _
    // Predicated region
    $region6: #{vae_forward.1} parent=1 // pred_check
      _
    $region7: #{vae_forward.1} parent=1 // pred_check_branch
      %34 = sbr.rel (0) target = $region9
    $region8: #{vae_forward.1} parent=1 // pred_region
      %s36 = ssub.s32 2048, 2048
      %37 = vsyncadd [#allocation6], %s36
      %s38 = sshll.u32 [#allocation5], 4
      %s39 = int_to_ptr.vmem [resolvable:$true] %s38
      %44 = dma.hbm_to_vmem [thread:$0]  %s1, 2048, %s39, [#allocation6], 128, 128, 8
    $region9: #{vae_forward.1} parent=1 // pred_fallthru
      _
    // Predicated region
    $region10: #{vae_forward.1} parent=1 // pred_check
      _
    $region11: #{vae_forward.1} parent=1 // pred_check_branch
      %46 = sbr.rel (0) target = $region13
    $region12: #{vae_forward.1} parent=1 // pred_region
      %s48 = ssub.s32 2048, 2048
      %49 = vsyncadd [#allocation6], %s48
      %s50 = sshll.u32 [#allocation7], 4
      %s51 = int_to_ptr.vmem [resolvable:$true] %s50
      %56 = dma.hbm_to_vmem [thread:$0]  %s2, 2048, %s51, [#allocation6], 128, 128, 8
    $region13: #{vae_forward.1} parent=1 // pred_fallthru
      _
    // Predicated region
    $region14: #{vae_forward.1} parent=1 // pred_check
      _
    $region15: #{vae_forward.1} parent=1 // pred_check_branch
      %58 = sbr.rel (0) target = $region17
    $region16: #{vae_forward.1} parent=1 // pred_region
      %s60 = ssub.s32 16, 16
      %61 = vsyncadd [#allocation9], %s60
      %s63 = sshll.u32 [#allocation8], 4
      %s64 = int_to_ptr.vmem [resolvable:$true] %s63
      %66 = dma.hbm_to_vmem [thread:$0]  %s3, 16, %s64, [#allocation9]
    $region17: #{vae_forward.1} parent=1 // pred_fallthru
      _
    // Predicated region
    $region18: #{vae_forward.1} parent=1 // pred_check
      _
    $region19: #{vae_forward.1} parent=1 // pred_check_branch
      %68 = sbr.rel (0) target = $region21
    $region20: #{vae_forward.1} parent=1 // pred_region
      %s70 = ssub.s32 16, 16
      %71 = vsyncadd [#allocation9], %s70
      %s73 = sshll.u32 [#allocation10], 4
      %s74 = int_to_ptr.vmem [resolvable:$true] %s73
      %76 = dma.hbm_to_vmem [thread:$0]  %s4, 16, %s74, [#allocation9]
    $region21: #{vae_forward.1} parent=1 // pred_fallthru
      _
    // Predicated region
    $region22: #{vae_forward.1} parent=1 // pred_check
      _
    $region23: #{vae_forward.1} parent=1 // pred_check_branch
      %78 = sbr.rel (0) target = $region25
    $region24: #{vae_forward.1} parent=1 // pred_region
      %s80 = ssub.s32 2048, 2048
      %81 = vsyncadd [#allocation12], %s80
      %s82 = sshll.u32 [#allocation11], 4
      %s83 = int_to_ptr.vmem [resolvable:$true] %s82
      %88 = dma.hbm_to_vmem [thread:$0]  %s5, 2048, %s83, [#allocation12], 128, 128, 8
    $region25: #{vae_forward.1} parent=1 // pred_fallthru
      _
    // Predicated region
    $region26: #{vae_forward.1} parent=1 // pred_check
      _
    $region27: #{vae_forward.1} parent=1 // pred_check_branch
      %90 = sbr.rel (0) target = $region29
    $region28: #{vae_forward.1} parent=1 // pred_region
      %s92 = ssub.s32 16, 16
      %93 = vsyncadd [#allocation12], %s92
      %s95 = sshll.u32 [#allocation13], 4
      %s96 = int_to_ptr.vmem [resolvable:$true] %s95
      %98 = dma.hbm_to_vmem [thread:$0]  %s6, 16, %s96, [#allocation12]
    $region29: #{vae_forward.1} parent=1 // pred_fallthru
      _
    // Predicated region
    $region30: #{vae_forward.1} parent=1 // pred_check
      _
    $region31: #{vae_forward.1} parent=1 // pred_check_branch
      %100 = sbr.rel (0) target = $region33
    $region32: #{vae_forward.1} parent=1 // pred_region
      %s102 = ssub.s32 128, 128
      %103 = vsyncadd [#allocation15], %s102
      %s105 = sshll.u32 [#allocation14], 4
      %s106 = int_to_ptr.vmem [resolvable:$true] %s105
      %108 = dma.hbm_to_vmem [thread:$0]  %s7, 128, %s106, [#allocation15]
    $region33: #{vae_forward.1} parent=1 // pred_fallthru
      _
    // Predicated region
    $region34: #{vae_forward.1} parent=1 // pred_check
      _
    $region35: #{vae_forward.1} parent=1 // pred_check_branch
      %110 = sbr.rel (0) target = $region37
    $region36: #{vae_forward.1} parent=1 // pred_region
      %111 = dma.done [#allocation3], 128
    $region37: #{vae_forward.1} parent=1 // pred_fallthru
      _
    // Predicated region
    $region38: #{vae_forward.1} parent=1 // pred_check
      _
    $region39: #{vae_forward.1} parent=1 // pred_check_branch
      %113 = sbr.rel (0) target = $region41
    $region40: #{vae_forward.1} parent=1 // pred_region
      %114 = dma.done [#allocation6], 2048
    $region41: #{vae_forward.1} parent=1 // pred_fallthru
      _
    // Predicated region
    $region42: #{vae_forward.1} parent=1 // pred_check
      _
    $region43: #{vae_forward.1} parent=1 // pred_check_branch
      %116 = sbr.rel (0) target = $region45
    $region44: #{vae_forward.1} parent=1 // pred_region
      %117 = dma.done [#allocation6], 2048
    $region45: #{vae_forward.1} parent=1 // pred_fallthru
      _
    // Predicated region
    $region46: #{vae_forward.1} parent=1 // pred_check
      _
    $region47: #{vae_forward.1} parent=1 // pred_check_branch
      %119 = sbr.rel (0) target = $region49
    $region48: #{vae_forward.1} parent=1 // pred_region
      %120 = dma.done [#allocation9], 16
    $region49: #{vae_forward.1} parent=1 // pred_fallthru
      _
    // Predicated region
    $region50: #{vae_forward.1} parent=1 // pred_check
      _
    $region51: #{vae_forward.1} parent=1 // pred_check_branch
      %122 = sbr.rel (0) target = $region53
    $region52: #{vae_forward.1} parent=1 // pred_region
      %123 = dma.done [#allocation9], 16
    $region53: #{vae_forward.1} parent=1 // pred_fallthru
      _
    // Predicated region
    $region54: #{vae_forward.1} parent=1 // pred_check
      _
    $region55: #{vae_forward.1} parent=1 // pred_check_branch
      %125 = sbr.rel (0) target = $region57
    $region56: #{vae_forward.1} parent=1 // pred_region
      %126 = dma.done [#allocation12], 2048
    $region57: #{vae_forward.1} parent=1 // pred_fallthru
      _
    // Predicated region
    $region58: #{vae_forward.1} parent=1 // pred_check
      _
    $region59: #{vae_forward.1} parent=1 // pred_check_branch
      %128 = sbr.rel (0) target = $region61
    $region60: #{vae_forward.1} parent=1 // pred_region
      %129 = dma.done [#allocation12], 16
    $region61: #{vae_forward.1} parent=1 // pred_fallthru
      _
    // Predicated region
    $region62: #{vae_forward.1} parent=1 // pred_check
      _
    $region63: #{vae_forward.1} parent=1 // pred_check_branch
      %131 = sbr.rel (0) target = $region65
    $region64: #{vae_forward.1} parent=1 // pred_region
      %132 = dma.done [#allocation15], 128
    $region65: #{vae_forward.1} parent=1 // pred_fallthru
      _
    %v133 = vld [vmem:[#allocation2] sm:$0xff]
    %v134 = vld [vmem:[#allocation5] sm:$0xff]
    %v135 = vld [vmem:[#allocation5 + $0x8] sm:$0xff]
    %v136 = vld [vmem:[#allocation5 + $0x10] sm:$0xff]
    %v137 = vld [vmem:[#allocation5 + $0x18] sm:$0xff]
    %v138 = vld [vmem:[#allocation5 + $0x20] sm:$0xff]
    %v139 = vld [vmem:[#allocation5 + $0x28] sm:$0xff]
    %v140 = vld [vmem:[#allocation5 + $0x30] sm:$0xff]
    %v141 = vld [vmem:[#allocation5 + $0x38] sm:$0xff]
    %v142 = vld [vmem:[#allocation5 + $0x40] sm:$0xff]
    %v143 = vld [vmem:[#allocation5 + $0x48] sm:$0xff]
    %v144 = vld [vmem:[#allocation5 + $0x50] sm:$0xff]
    %v145 = vld [vmem:[#allocation5 + $0x58] sm:$0xff]
    %v146 = vld [vmem:[#allocation5 + $0x60] sm:$0xff]
    %v147 = vld [vmem:[#allocation5 + $0x68] sm:$0xff]
    %v148 = vld [vmem:[#allocation5 + $0x70] sm:$0xff]
    %v149 = vld [vmem:[#allocation5 + $0x78] sm:$0xff]
    %v150 = vld [vmem:[#allocation8] sm:$0x1]
    %v152 = vlaneseq
    %v153 = vshrl.u32 %v152, 7
    %v154 = vsub.s32 0, %v153
    %v155 = vrot.slane %v150, %v154
    %157 = vmatprep.subr.mxu0 0.0
    %158 = vmatpush1.msra.mxu0 %v134
    %159 = vmatprep.subr.mxu0 0.0
    %160 = vmatpush1.msra.mxu0 %v135
    %161 = vmatprep.subr.mxu0 0.0
    %162 = vmatpush1.msra.mxu0 %v136
    %163 = vmatprep.subr.mxu0 0.0
    %164 = vmatpush1.msra.mxu0 %v137
    %165 = vmatprep.subr.mxu0 0.0
    %166 = vmatpush1.msra.mxu0 %v138
    %167 = vmatprep.subr.mxu0 0.0
    %168 = vmatpush1.msra.mxu0 %v139
    %169 = vmatprep.subr.mxu0 0.0
    %170 = vmatpush1.msra.mxu0 %v140
    %171 = vmatprep.subr.mxu0 0.0
    %172 = vmatpush1.msra.mxu0 %v141
    %173 = vmatprep.subr.mxu0 0.0
    %174 = vmatpush1.msra.mxu0 %v142
    %175 = vmatprep.subr.mxu0 0.0
    %176 = vmatpush1.msra.mxu0 %v143
    %177 = vmatprep.subr.mxu0 0.0
    %178 = vmatpush1.msra.mxu0 %v144
    %179 = vmatprep.subr.mxu0 0.0
    %180 = vmatpush1.msra.mxu0 %v145
    %181 = vmatprep.subr.mxu0 0.0
    %182 = vmatpush1.msra.mxu0 %v146
    %183 = vmatprep.subr.mxu0 0.0
    %184 = vmatpush1.msra.mxu0 %v147
    %185 = vmatprep.subr.mxu0 0.0
    %186 = vmatpush1.msra.mxu0 %v148
    %187 = vmatprep.subr.mxu0 0.0
    %188 = vmatpush1.msra.mxu0 %v149
    %189 = vmatprep.subr.mxu0 0.0
    %190 = vmatpush1.msra.mxu0 0.0
    %191 = vmatprep.subr.mxu0 0.0
    %192 = vmatpush1.msra.mxu0 0.0
    %193 = vmatprep.subr.mxu0 0.0
    %194 = vmatpush1.msra.mxu0 0.0
    %195 = vmatprep.subr.mxu0 0.0
    %196 = vmatpush1.msra.mxu0 0.0
    %197 = vmatprep.subr.mxu0 0.0
    %198 = vmatpush1.msra.mxu0 0.0
    %199 = vmatprep.subr.mxu0 0.0
    %200 = vmatpush1.msra.mxu0 0.0
    %201 = vmatprep.subr.mxu0 0.0
    %202 = vmatpush1.msra.mxu0 0.0
    %203 = vmatprep.subr.mxu0 0.0
    %204 = vmatpush1.msra.mxu0 0.0
    %205 = vmatprep.subr.mxu0 0.0
    %206 = vmatpush1.msra.mxu0 0.0
    %207 = vmatprep.subr.mxu0 0.0
    %208 = vmatpush1.msra.mxu0 0.0
    %209 = vmatprep.subr.mxu0 0.0
    %210 = vmatpush1.msra.mxu0 0.0
    %211 = vmatprep.subr.mxu0 0.0
    %212 = vmatpush1.msra.mxu0 0.0
    %213 = vmatprep.subr.mxu0 0.0
    %214 = vmatpush1.msra.mxu0 0.0
    %215 = vmatprep.subr.mxu0 0.0
    %216 = vmatpush1.msra.mxu0 0.0
    %217 = vmatprep.subr.mxu0 0.0
    %218 = vmatpush1.msra.mxu0 0.0
    %219 = vmatprep.subr.mxu0 0.0
    %220 = vmatpush1.msra.mxu0 0.0
    %221 = vmatprep.mubr.f32.mxu0 0.0
    %222 = vmatmul.mubr.f32.gmra.mrb[0].mxu0 %v133
    %v223 = vpop.f32.mrb[0].mxu0
    %v224 = vadd.f32 %v155, %v223
    %v225 = vpop.f32.mrb[0].mxu0
    %226 = vdwg.mxu0
    %v227 = vld [vmem:[#allocation7] sm:$0xff]
    %v228 = vld [vmem:[#allocation7 + $0x8] sm:$0xff]
    %v229 = vld [vmem:[#allocation7 + $0x10] sm:$0xff]
    %v230 = vld [vmem:[#allocation7 + $0x18] sm:$0xff]
    %v231 = vld [vmem:[#allocation7 + $0x20] sm:$0xff]
    %v232 = vld [vmem:[#allocation7 + $0x28] sm:$0xff]
    %v233 = vld [vmem:[#allocation7 + $0x30] sm:$0xff]
    %v234 = vld [vmem:[#allocation7 + $0x38] sm:$0xff]
    %v235 = vld [vmem:[#allocation7 + $0x40] sm:$0xff]
    %v236 = vld [vmem:[#allocation7 + $0x48] sm:$0xff]
    %v237 = vld [vmem:[#allocation7 + $0x50] sm:$0xff]
    %v238 = vld [vmem:[#allocation7 + $0x58] sm:$0xff]
    %v239 = vld [vmem:[#allocation7 + $0x60] sm:$0xff]
    %v240 = vld [vmem:[#allocation7 + $0x68] sm:$0xff]
    %v241 = vld [vmem:[#allocation7 + $0x70] sm:$0xff]
    %v242 = vld [vmem:[#allocation7 + $0x78] sm:$0xff]
    %v243 = vld [vmem:[#allocation10] sm:$0x1]
    %v245 = vlaneseq
    %v246 = vshrl.u32 %v245, 7
    %v247 = vsub.s32 0, %v246
    %v248 = vrot.slane %v243, %v247
    %250 = vmatprep.subr.mxu0 0.0
    %251 = vmatpush1.msra.mxu0 %v227
    %252 = vmatprep.subr.mxu0 0.0
    %253 = vmatpush1.msra.mxu0 %v228
    %254 = vmatprep.subr.mxu0 0.0
    %255 = vmatpush1.msra.mxu0 %v229
    %256 = vmatprep.subr.mxu0 0.0
    %257 = vmatpush1.msra.mxu0 %v230
    %258 = vmatprep.subr.mxu0 0.0
    %259 = vmatpush1.msra.mxu0 %v231
    %260 = vmatprep.subr.mxu0 0.0
    %261 = vmatpush1.msra.mxu0 %v232
    %262 = vmatprep.subr.mxu0 0.0
    %263 = vmatpush1.msra.mxu0 %v233
    %264 = vmatprep.subr.mxu0 0.0
    %265 = vmatpush1.msra.mxu0 %v234
    %266 = vmatprep.subr.mxu0 0.0
    %267 = vmatpush1.msra.mxu0 %v235
    %268 = vmatprep.subr.mxu0 0.0
    %269 = vmatpush1.msra.mxu0 %v236
    %270 = vmatprep.subr.mxu0 0.0
    %271 = vmatpush1.msra.mxu0 %v237
    %272 = vmatprep.subr.mxu0 0.0
    %273 = vmatpush1.msra.mxu0 %v238
    %274 = vmatprep.subr.mxu0 0.0
    %275 = vmatpush1.msra.mxu0 %v239
    %276 = vmatprep.subr.mxu0 0.0
    %277 = vmatpush1.msra.mxu0 %v240
    %278 = vmatprep.subr.mxu0 0.0
    %279 = vmatpush1.msra.mxu0 %v241
    %280 = vmatprep.subr.mxu0 0.0
    %281 = vmatpush1.msra.mxu0 %v242
    %282 = vmatprep.subr.mxu0 0.0
    %283 = vmatpush1.msra.mxu0 0.0
    %284 = vmatprep.subr.mxu0 0.0
    %285 = vmatpush1.msra.mxu0 0.0
    %286 = vmatprep.subr.mxu0 0.0
    %287 = vmatpush1.msra.mxu0 0.0
    %288 = vmatprep.subr.mxu0 0.0
    %289 = vmatpush1.msra.mxu0 0.0
    %290 = vmatprep.subr.mxu0 0.0
    %291 = vmatpush1.msra.mxu0 0.0
    %292 = vmatprep.subr.mxu0 0.0
    %293 = vmatpush1.msra.mxu0 0.0
    %294 = vmatprep.subr.mxu0 0.0
    %295 = vmatpush1.msra.mxu0 0.0
    %296 = vmatprep.subr.mxu0 0.0
    %297 = vmatpush1.msra.mxu0 0.0
    %298 = vmatprep.subr.mxu0 0.0
    %299 = vmatpush1.msra.mxu0 0.0
    %300 = vmatprep.subr.mxu0 0.0
    %301 = vmatpush1.msra.mxu0 0.0
    %302 = vmatprep.subr.mxu0 0.0
    %303 = vmatpush1.msra.mxu0 0.0
    %304 = vmatprep.subr.mxu0 0.0
    %305 = vmatpush1.msra.mxu0 0.0
    %306 = vmatprep.subr.mxu0 0.0
    %307 = vmatpush1.msra.mxu0 0.0
    %308 = vmatprep.subr.mxu0 0.0
    %309 = vmatpush1.msra.mxu0 0.0
    %310 = vmatprep.subr.mxu0 0.0
    %311 = vmatpush1.msra.mxu0 0.0
    %312 = vmatprep.subr.mxu0 0.0
    %313 = vmatpush1.msra.mxu0 0.0
    %314 = vmatprep.mubr.f32.mxu0 0.0
    %315 = vmatmul.mubr.f32.gmra.mrb[0].mxu0 %v133
    %v316 = vpop.f32.mrb[0].mxu0
    %v317 = vadd.f32 %v248, %v316
    %v318 = vpop.f32.mrb[0].mxu0
    %319 = vdwg.mxu0
    %v320 = vmax.f32 %v317, -10.0
    %v321 = vmin.f32 %v320, 2.0
    %v322 = vmul.f32 %v321, 0.5
    %v323 = vmul.f32 %v322, 1.442695
    %v324 = vpow.pop %v323
    %v325 = vld [vmem:[#allocation14] sm:$0xff]
    %v326 = vmul.f32 %v324, %v325
    %v327 = vadd.f32 %v224, %v326
    %v328 = vld [vmem:[#allocation11] sm:$0xff]
    %v329 = vld [vmem:[#allocation11 + $0x8] sm:$0xff]
    %v330 = vld [vmem:[#allocation11 + $0x10] sm:$0xff]
    %v331 = vld [vmem:[#allocation11 + $0x18] sm:$0xff]
    %v332 = vld [vmem:[#allocation11 + $0x20] sm:$0xff]
    %v333 = vld [vmem:[#allocation11 + $0x28] sm:$0xff]
    %v334 = vld [vmem:[#allocation11 + $0x30] sm:$0xff]
    %v335 = vld [vmem:[#allocation11 + $0x38] sm:$0xff]
    %v336 = vld [vmem:[#allocation11 + $0x40] sm:$0xff]
    %v337 = vld [vmem:[#allocation11 + $0x48] sm:$0xff]
    %v338 = vld [vmem:[#allocation11 + $0x50] sm:$0xff]
    %v339 = vld [vmem:[#allocation11 + $0x58] sm:$0xff]
    %v340 = vld [vmem:[#allocation11 + $0x60] sm:$0xff]
    %v341 = vld [vmem:[#allocation11 + $0x68] sm:$0xff]
    %v342 = vld [vmem:[#allocation11 + $0x70] sm:$0xff]
    %v343 = vld [vmem:[#allocation11 + $0x78] sm:$0xff]
    %v344 = vld [vmem:[#allocation13] sm:$0x1]
    %v346 = vlaneseq
    %v347 = vshrl.u32 %v346, 7
    %v348 = vsub.s32 0, %v347
    %v349 = vrot.slane %v344, %v348
    %351 = vmatprep.subr.mxu0 0.0
    %352 = vmatpush1.msra.mxu0 %v328
    %353 = vmatprep.subr.mxu0 0.0
    %354 = vmatpush1.msra.mxu0 %v329
    %355 = vmatprep.subr.mxu0 0.0
    %356 = vmatpush1.msra.mxu0 %v330
    %357 = vmatprep.subr.mxu0 0.0
    %358 = vmatpush1.msra.mxu0 %v331
    %359 = vmatprep.subr.mxu0 0.0
    %360 = vmatpush1.msra.mxu0 %v332
    %361 = vmatprep.subr.mxu0 0.0
    %362 = vmatpush1.msra.mxu0 %v333
    %363 = vmatprep.subr.mxu0 0.0
    %364 = vmatpush1.msra.mxu0 %v334
    %365 = vmatprep.subr.mxu0 0.0
    %366 = vmatpush1.msra.mxu0 %v335
    %367 = vmatprep.subr.mxu0 0.0
    %368 = vmatpush1.msra.mxu0 %v336
    %369 = vmatprep.subr.mxu0 0.0
    %370 = vmatpush1.msra.mxu0 %v337
    %371 = vmatprep.subr.mxu0 0.0
    %372 = vmatpush1.msra.mxu0 %v338
    %373 = vmatprep.subr.mxu0 0.0
    %374 = vmatpush1.msra.mxu0 %v339
    %375 = vmatprep.subr.mxu0 0.0
    %376 = vmatpush1.msra.mxu0 %v340
    %377 = vmatprep.subr.mxu0 0.0
    %378 = vmatpush1.msra.mxu0 %v341
    %379 = vmatprep.subr.mxu0 0.0
    %380 = vmatpush1.msra.mxu0 %v342
    %381 = vmatprep.subr.mxu0 0.0
    %382 = vmatpush1.msra.mxu0 %v343
    %383 = vmatprep.subr.mxu0 0.0
    %384 = vmatpush1.msra.mxu0 0.0
    %385 = vmatprep.subr.mxu0 0.0
    %386 = vmatpush1.msra.mxu0 0.0
    %387 = vmatprep.subr.mxu0 0.0
    %388 = vmatpush1.msra.mxu0 0.0
    %389 = vmatprep.subr.mxu0 0.0
    %390 = vmatpush1.msra.mxu0 0.0
    %391 = vmatprep.subr.mxu0 0.0
    %392 = vmatpush1.msra.mxu0 0.0
    %393 = vmatprep.subr.mxu0 0.0
    %394 = vmatpush1.msra.mxu0 0.0
    %395 = vmatprep.subr.mxu0 0.0
    %396 = vmatpush1.msra.mxu0 0.0
    %397 = vmatprep.subr.mxu0 0.0
    %398 = vmatpush1.msra.mxu0 0.0
    %399 = vmatprep.subr.mxu0 0.0
    %400 = vmatpush1.msra.mxu0 0.0
    %401 = vmatprep.subr.mxu0 0.0
    %402 = vmatpush1.msra.mxu0 0.0
    %403 = vmatprep.subr.mxu0 0.0
    %404 = vmatpush1.msra.mxu0 0.0
    %405 = vmatprep.subr.mxu0 0.0
    %406 = vmatpush1.msra.mxu0 0.0
    %407 = vmatprep.subr.mxu0 0.0
    %408 = vmatpush1.msra.mxu0 0.0
    %409 = vmatprep.subr.mxu0 0.0
    %410 = vmatpush1.msra.mxu0 0.0
    %411 = vmatprep.subr.mxu0 0.0
    %412 = vmatpush1.msra.mxu0 0.0
    %413 = vmatprep.subr.mxu0 0.0
    %414 = vmatpush1.msra.mxu0 0.0
    %415 = vmatprep.mubr.f32.mxu0 0.0
    %416 = vmatmul.mubr.f32.gmra.mrb[0].mxu0 %v327
    %v417 = vpop.f32.mrb[0].mxu0
    %v418 = vadd.f32 %v349, %v417
    %v419 = vpop.f32.mrb[0].mxu0
    %420 = vdwg.mxu0
    %v421 = vxor.u32 %v418, 2147483648
    %v422 = vmul.f32 %v421, 1.442695
    %v423 = vpow.pop %v422
    %v424 = vadd.f32 %v423, 1.0
    %v425 = vrcp.pop %v424
    %v426 = vmul.f32 1.0, %v425
    %427 = vst [vmem:[#allocation16] sm:$0xff] %v426
    %428 = vst [vmem:[#allocation17] sm:$0xff] %v224
    %429 = vst [vmem:[#allocation19] sm:$0xff] %v321
    // Predicated region
    $region66: #{vae_forward.1} parent=1 // pred_check
      _
    $region67: #{vae_forward.1} parent=1 // pred_check_branch
      %431 = sbr.rel (0) target = $region69
    $region68: #{vae_forward.1} parent=1 // pred_region
      %s433 = ssub.s32 128, 128
      %434 = vsyncadd [#allocation4], %s433
      %s436 = sshll.u32 [#allocation16], 4
      %s437 = int_to_ptr.vmem [resolvable:$true] %s436
      %439 = dma.vmem_to_hbm [thread:$0]  %s437, 128, %s8, [#allocation4]
    $region69: #{vae_forward.1} parent=1 // pred_fallthru
      _
    // Predicated region
    $region70: #{vae_forward.1} parent=1 // pred_check
      _
    $region71: #{vae_forward.1} parent=1 // pred_check_branch
      %441 = sbr.rel (0) target = $region73
    $region72: #{vae_forward.1} parent=1 // pred_region
      %s443 = ssub.s32 128, 128
      %444 = vsyncadd [#allocation18], %s443
      %s446 = sshll.u32 [#allocation17], 4
      %s447 = int_to_ptr.vmem [resolvable:$true] %s446
      %449 = dma.vmem_to_hbm [thread:$0]  %s447, 128, %s9, [#allocation18]
    $region73: #{vae_forward.1} parent=1 // pred_fallthru
      _
    // Predicated region
    $region74: #{vae_forward.1} parent=1 // pred_check
      _
    $region75: #{vae_forward.1} parent=1 // pred_check_branch
      %451 = sbr.rel (0) target = $region77
    $region76: #{vae_forward.1} parent=1 // pred_region
      %s453 = ssub.s32 128, 128
      %454 = vsyncadd [#allocation18], %s453
      %s456 = sshll.u32 [#allocation19], 4
      %s457 = int_to_ptr.vmem [resolvable:$true] %s456
      %459 = dma.vmem_to_hbm [thread:$0]  %s457, 128, %s10, [#allocation18]
    $region77: #{vae_forward.1} parent=1 // pred_fallthru
      _
    // Predicated region
    $region78: #{vae_forward.1} parent=1 // pred_check
      _
    $region79: #{vae_forward.1} parent=1 // pred_check_branch
      %461 = sbr.rel (0) target = $region81
    $region80: #{vae_forward.1} parent=1 // pred_region
      %462 = dma.done [#allocation4], 128
    $region81: #{vae_forward.1} parent=1 // pred_fallthru
      _
    // Predicated region
    $region82: #{vae_forward.1} parent=1 // pred_check
      _
    $region83: #{vae_forward.1} parent=1 // pred_check_branch
      %464 = sbr.rel (0) target = $region85
    $region84: #{vae_forward.1} parent=1 // pred_region
      %465 = dma.done [#allocation18], 128
    $region85: #{vae_forward.1} parent=1 // pred_fallthru
      _
    // Predicated region
    $region86: #{vae_forward.1} parent=1 // pred_check
      _
    $region87: #{vae_forward.1} parent=1 // pred_check_branch
      %467 = sbr.rel (0) target = $region89
    $region88: #{vae_forward.1} parent=1 // pred_region
      %468 = dma.done [#allocation18], 128
    $region89: #{vae_forward.1} parent=1 // pred_fallthru
      _
    %469 = vsyncpa [#allocation3], 1
    %470 = vsyncpa [#allocation6], 1
    %471 = vsyncpa [#allocation9], 1
    %472 = vsyncpa [#allocation12], 1
    %473 = vsyncpa [#allocation15], 1
    %474 = vsyncpa [#allocation4], 1
    %475 = vsyncpa [#allocation18], 1

</llo_original>
